<compile_context>
chip_gen: v7x
topology: tpu7x:2x2x1
jax: 0.10.0
libtpu: 0.0.40
codegen_flags: <defaults>
</compile_context>

<pallas_src>
import functools

import jax
import jax.numpy as jnp
from jax.experimental import pallas as pl
from jax.experimental.pallas import tpu as pltpu


def _round_up(x, m):
    return (x + m - 1) // m * m


def _cdiv(a, b):
    return (a + b - 1) // b


def _ffn_kernel(x_ref, w1_ref, b1_ref, w2_ref, b2_ref, gamma_ref, beta_ref,
                o_ref, acc_ref, *, d_true, d_pad, eps, matmul_dtype):
    k = pl.program_id(1)
    nk = pl.num_programs(1)

    @pl.when(k == 0)
    def _():
        acc_ref[...] = jnp.zeros_like(acc_ref)

    # Residual / matmul input stays in f32 on the VPU.
    x = x_ref[...].astype(jnp.float32)                       # (tm, Dp)
    b1 = b1_ref[...].astype(jnp.float32)                     # (1, Hc)

    # fc1 chunk + ReLU : low-precision MXU inputs, f32 accumulation.
    h = jnp.dot(x.astype(matmul_dtype), w1_ref[...],
                preferred_element_type=jnp.float32)           # (tm, Hc)
    h = jnp.maximum(h + b1, 0.0)

    # fc2 chunk, accumulated over H chunks in f32.
    acc_ref[...] += jnp.dot(h.astype(matmul_dtype), w2_ref[...],
                            preferred_element_type=jnp.float32)

    @pl.when(k == nk - 1)
    def _():
        b2 = b2_ref[...].astype(jnp.float32)                  # (1, Dp)
        gamma = gamma_ref[...].astype(jnp.float32)            # (1, Dp)
        beta = beta_ref[...].astype(jnp.float32)              # (1, Dp)

        # dropout(p=0.0) is the identity; residual add.
        y = acc_ref[...] + b2 + x                              # (tm, Dp)

        # LayerNorm over the true (unpadded) feature dim.  Padded columns of
        # y are exactly 0 (zero-padded x, weights and biases), so:
        #   sum(y)            is already the true row sum,
        #   sum((y-mu)^2)     overcounts by (Dp - D) * mu^2  -> subtract it.
        inv_d = jnp.float32(1.0 / d_true)
        mu = jnp.sum(y, axis=-1, keepdims=True) * inv_d
        diff = y - mu
        ssq = jnp.sum(diff * diff, axis=-1, keepdims=True)
        if d_pad != d_true:
            ssq = ssq - jnp.float32(d_pad - d_true) * (mu * mu)
        var = ssq * inv_d
        out = diff * jax.lax.rsqrt(var + jnp.float32(eps)) * gamma + beta
        # gamma/beta are zero-padded, so padded output columns come out as 0.
        o_ref[...] = out.astype(o_ref.dtype)


def position_wise_feed_forward(x, w1, b1, w2, b2, gamma, beta, *,
                               tile_rows=512,
                               matmul_dtype=jnp.bfloat16,
                               eps=1e-5):
    """x: [B, L, D]; w1: [D, H]; b1: [H]; w2: [H, D]; b2: [D]; gamma/beta: [D].

    Weights are stored pre-transposed as (in_features, out_features).
    """
    B, L, D = x.shape
    Din, H = w1.shape
    assert Din == D and w2.shape == (H, D)

    rows = B * L
    elt_w = jnp.dtype(matmul_dtype).itemsize
    out_itemsize = jnp.dtype(x.dtype).itemsize

    # --- Generation-aware VMEM capacity -----------------------------------
    try:
        vmem_cap = int(getattr(pltpu.get_tpu_info(), "vmem_capacity_bytes",
                               64 * 1024 * 1024))
    except Exception:  # interpret / non-TPU fallback
        vmem_cap = 64 * 1024 * 1024

    # --- Lane-dense padding & H-chunking -----------------------------------
    Dp = _round_up(D, 128)
    Hp0 = _round_up(H, 128)

    # If both (pre-transposed) weight matrices fit in ~40% of VMEM they stay
    # fully resident (single-buffered, constant index).  Otherwise stream H
    # in double-buffered chunks.
    w_budget = int(0.40 * vmem_cap)
    full_w_bytes = 2 * Dp * Hp0 * elt_w
    if full_w_bytes <= w_budget:
        nh, Hc = 1, Hp0
    else:
        # 2 matrices * 2 buffers * Dp * Hc * elt_w <= w_budget
        hc_max = max(128, (w_budget // (4 * Dp * elt_w)) // 128 * 128)
        nh = _cdiv(Hp0, hc_max)
        Hc = _round_up(_cdiv(Hp0, nh), 128)
    Hp = nh * Hc

    # Row tile: multiple of 8 (f32 sublane), and >= 2 row-grid steps whenever
    # possible so v7x's second TensorCore gets work.
    tm = min(tile_rows, max(8, _round_up(_cdiv(rows, 2), 8)))
    rows_p = _round_up(rows, tm)
    grid = (rows_p // tm, nh)

    # --- Host-side padding / dtype prep ------------------------------------
    x2d = x.reshape(rows, D)
    x2d = jnp.pad(x2d, ((0, rows_p - rows), (0, Dp - D)))

    w1p = jnp.pad(w1, ((0, Dp - D), (0, Hp - H))).astype(matmul_dtype)
    w2p = jnp.pad(w2, ((0, Hp - H), (0, Dp - D))).astype(matmul_dtype)
    b1p = jnp.pad(b1, (0, Hp - H)).reshape(1, Hp).astype(jnp.float32)
    b2p = jnp.pad(b2, (0, Dp - D)).reshape(1, Dp).astype(jnp.float32)
    gammap = jnp.pad(gamma, (0, Dp - D)).reshape(1, Dp).astype(jnp.float32)
    betap = jnp.pad(beta, (0, Dp - D)).reshape(1, Dp).astype(jnp.float32)

    kernel = functools.partial(_ffn_kernel, d_true=D, d_pad=Dp, eps=eps,
                               matmul_dtype=matmul_dtype)

    # --- VMEM budget --------------------------------------------------------
    nbuf_w = 1 if nh == 1 else 2
    vmem_need = (
        2 * tm * Dp * 4                          # x tile (double-buffered, f32)
        + 2 * tm * Dp * out_itemsize             # out tile (double-buffered)
        + nbuf_w * (Dp * Hc + Hc * Dp) * elt_w   # w1 + w2 chunk buffers
        + nbuf_w * Hc * 4                        # b1 chunk buffers
        + 3 * Dp * 4                             # b2 / gamma / beta (single)
        + tm * Dp * 4                            # f32 accumulator scratch
        + tm * Hc * (4 + elt_w)                  # fc1 intermediate f32 + bf16
        + tm * Dp * (2 * 4 + elt_w)              # x copies + LayerNorm temps
    )
    vmem_limit = int(min(max(int(1.25 * vmem_need), 32 * 1024 * 1024),
                         int(0.875 * vmem_cap)))

    flops = 4 * rows_p * Dp * Hp + 10 * rows_p * Dp
    bytes_accessed = (rows_p * Dp * 4 + (w1p.size + w2p.size) * elt_w
                      + rows_p * Dp * out_itemsize)

    wmode = pl.Buffered(1) if nh == 1 else None   # single-buffer resident weights
    cmode = pl.Buffered(1)                        # b2/gamma/beta always constant

    out2d = pl.pallas_call(
        kernel,
        out_shape=jax.ShapeDtypeStruct((rows_p, Dp), x.dtype),
        grid_spec=pltpu.PrefetchScalarGridSpec(
            num_scalar_prefetch=0,
            grid=grid,
            in_specs=[
                pl.BlockSpec((tm, Dp), lambda i, k: (i, 0)),                        # x rows
                pl.BlockSpec((Dp, Hc), lambda i, k: (0, k), pipeline_mode=wmode),   # w1
                pl.BlockSpec((1, Hc), lambda i, k: (0, k), pipeline_mode=wmode),    # b1
                pl.BlockSpec((Hc, Dp), lambda i, k: (k, 0), pipeline_mode=wmode),   # w2
                pl.BlockSpec((1, Dp), lambda i, k: (0, 0), pipeline_mode=cmode),    # b2
                pl.BlockSpec((1, Dp), lambda i, k: (0, 0), pipeline_mode=cmode),    # gamma
                pl.BlockSpec((1, Dp), lambda i, k: (0, 0), pipeline_mode=cmode),    # beta
            ],
            out_specs=pl.BlockSpec((tm, Dp), lambda i, k: (i, 0)),
            scratch_shapes=[pltpu.VMEM((tm, Dp), jnp.float32)],
        ),
        compiler_params=pltpu.CompilerParams(
            dimension_semantics=("parallel", "arbitrary"),
            vmem_limit_bytes=vmem_limit),
        cost_estimate=pl.CostEstimate(
            flops=int(flops),
            transcendentals=int(rows_p),
            bytes_accessed=int(bytes_accessed)),
    )(x2d, w1p, b1p, w2p, b2p, gammap, betap)

    return out2d[:rows, :D].reshape(B, L, D)


def _reference(x, w1, b1, w2, b2, gamma, beta):
    h = jnp.maximum(x @ w1 + b1, 0.0)
    y = h @ w2 + b2
    y = y + x
    mu = jnp.mean(y, axis=-1, keepdims=True)
    var = jnp.mean((y - mu) ** 2, axis=-1, keepdims=True)
    return (y - mu) / jnp.sqrt(var + 1e-5) * gamma + beta


if __name__ == "__main__":
    # Small shapes implied by the module: [batch, seq, dim_model] with hidden.
    B, L, D, H = 2, 8, 32, 64

    key = jax.random.PRNGKey(0)
    kx, k1, kb1, k2, kb2 = jax.random.split(key, 5)

    x = jax.random.normal(kx, (B, L, D), dtype=jnp.float32)

    # Deterministic parameter init (shapes from nn.Linear / nn.LayerNorm).
    # fc1.weight is (H, D) in torch; we store the transpose (D, H).
    w1 = jax.random.normal(k1, (D, H), dtype=jnp.float32) * 0.1
    b1 = jax.random.normal(kb1, (H,), dtype=jnp.float32) * 0.1
    w2 = jax.random.normal(k2, (H, D), dtype=jnp.float32) * 0.1
    b2 = jax.random.normal(kb2, (D,), dtype=jnp.float32) * 0.1
    gamma = jnp.ones((D,), dtype=jnp.float32)
    beta = jnp.zeros((D,), dtype=jnp.float32)

    out = position_wise_feed_forward(x, w1, b1, w2, b2, gamma, beta)
    out = jax.block_until_ready(out)

    ref = _reference(x, w1, b1, w2, b2, gamma, beta)
    assert out.shape == (B, L, D)
    # Tolerance accounts for the intentional bf16-input / f32-accumulate matmul.
    assert jnp.allclose(out, ref, atol=2e-2, rtol=2e-2), "mismatch vs reference"

    print("KERNEL_OK")
</pallas_src>

<mosaic_0001>
module attributes {stable_mosaic.version = 11 : i64} {
  func.func @_ffn_kernel(%arg0: i32, %arg1: i32, %arg2: memref<8x128xf32, #tpu.memory_space<vmem>>, %arg3: memref<128x128xbf16, #tpu.memory_space<vmem>>, %arg4: memref<1x128xf32, #tpu.memory_space<vmem>>, %arg5: memref<128x128xbf16, #tpu.memory_space<vmem>>, %arg6: memref<1x128xf32, #tpu.memory_space<vmem>>, %arg7: memref<1x128xf32, #tpu.memory_space<vmem>>, %arg8: memref<1x128xf32, #tpu.memory_space<vmem>>, %arg9: memref<8x128xf32, #tpu.memory_space<vmem>>, %arg10: memref<8x128xf32, #tpu.memory_space<vmem>>) attributes {dimension_semantics = [#tpu.dimension_semantics<parallel>, #tpu.dimension_semantics<arbitrary>], iteration_bounds = array<i64: 2, 1>, scalar_prefetch = 0 : i64, scratch_operands = 1 : i64, tpu.core_type = #tpu.core_type<tc>, window_params = [{transform_indices = @transform_0, window_bounds = array<i64: 8, 128>}, {pipeline_mode = #tpu.pipeline_mode<synchronous>, transform_indices = @transform_1, window_bounds = array<i64: 128, 128>}, {pipeline_mode = #tpu.pipeline_mode<synchronous>, transform_indices = @transform_2, window_bounds = array<i64: 1, 128>}, {pipeline_mode = #tpu.pipeline_mode<synchronous>, transform_indices = @transform_3, window_bounds = array<i64: 128, 128>}, {pipeline_mode = #tpu.pipeline_mode<synchronous>, transform_indices = @transform_4, window_bounds = array<i64: 1, 128>}, {pipeline_mode = #tpu.pipeline_mode<synchronous>, transform_indices = @transform_5, window_bounds = array<i64: 1, 128>}, {pipeline_mode = #tpu.pipeline_mode<synchronous>, transform_indices = @transform_6, window_bounds = array<i64: 1, 128>}, {transform_indices = @transform_7, window_bounds = array<i64: 8, 128>}]} {
    %c0_i32 = arith.constant 0 : i32
    %0 = arith.cmpi eq, %arg1, %c0_i32 : i32
    %1 = arith.extui %0 : i1 to i32
    %c0_i32_0 = arith.constant 0 : i32
    %2 = arith.cmpi ne, %1, %c0_i32_0 : i32
    scf.if %2 {
      %cst_16 = arith.constant 0.000000e+00 : f32
      %21 = vector.broadcast %cst_16 : f32 to vector<8x128xf32>
      %c0_17 = arith.constant 0 : index
      %c0_18 = arith.constant 0 : index
      %22 = vector.load %arg10[%c0_17, %c0_18] : memref<8x128xf32, #tpu.memory_space<vmem>>, vector<8x128xf32>
      tpu.vector_store %arg10[%c0_17, %c0_18], %21 {strides = array<i32>} : memref<8x128xf32, #tpu.memory_space<vmem>>, vector<8x128xf32>,
    } else {
    }
    %c0 = arith.constant 0 : index
    %c0_1 = arith.constant 0 : index
    %3 = vector.load %arg2[%c0, %c0_1] : memref<8x128xf32, #tpu.memory_space<vmem>>, vector<8x128xf32>
    %c0_2 = arith.constant 0 : index
    %c0_3 = arith.constant 0 : index
    %4 = vector.load %arg4[%c0_2, %c0_3] : memref<1x128xf32, #tpu.memory_space<vmem>>, vector<1x128xf32>
    %5 = arith.truncf %3 : vector<8x128xf32> to vector<8x128xbf16>
    %c0_4 = arith.constant 0 : index
    %c0_5 = arith.constant 0 : index
    %6 = vector.load %arg3[%c0_4, %c0_5] : memref<128x128xbf16, #tpu.memory_space<vmem>>, vector<128x128xbf16>
    %cst = arith.constant dense<0.000000e+00> : vector<8x128xf32>
    %7 = tpu.matmul %5, %6, %cst {dimension_numbers = #tpu.dot_dimension_numbers<[1], [0], [0], [1], [0, 0, 1, 1], [], []>} : vector<8x128xbf16>, vector<128x128xbf16>, vector<8x128xf32> -> vector<8x128xf32>
    %8 = vector.broadcast %4 : vector<1x128xf32> to vector<8x128xf32>
    %9 = arith.addf %7, %8 : vector<8x128xf32>
    %cst_6 = arith.constant 0.000000e+00 : f32
    %10 = vector.broadcast %cst_6 : f32 to vector<8x128xf32>
    %11 = arith.maximumf %9, %10 : vector<8x128xf32>
    %c0_7 = arith.constant 0 : index
    %c0_8 = arith.constant 0 : index
    %12 = vector.load %arg10[%c0_7, %c0_8] : memref<8x128xf32, #tpu.memory_space<vmem>>, vector<8x128xf32>
    %13 = arith.truncf %11 : vector<8x128xf32> to vector<8x128xbf16>
    %c0_9 = arith.constant 0 : index
    %c0_10 = arith.constant 0 : index
    %14 = vector.load %arg5[%c0_9, %c0_10] : memref<128x128xbf16, #tpu.memory_space<vmem>>, vector<128x128xbf16>
    %cst_11 = arith.constant dense<0.000000e+00> : vector<8x128xf32>
    %15 = tpu.matmul %13, %14, %cst_11 {dimension_numbers = #tpu.dot_dimension_numbers<[1], [0], [0], [1], [0, 0, 1, 1], [], []>} : vector<8x128xbf16>, vector<128x128xbf16>, vector<8x128xf32> -> vector<8x128xf32>
    %16 = arith.addf %12, %15 : vector<8x128xf32>
    %c0_12 = arith.constant 0 : index
    %c0_13 = arith.constant 0 : index
    %17 = vector.load %arg10[%c0_12, %c0_13] : memref<8x128xf32, #tpu.memory_space<vmem>>, vector<8x128xf32>
    tpu.vector_store %arg10[%c0_12, %c0_13], %16 {strides = array<i32>} : memref<8x128xf32, #tpu.memory_space<vmem>>, vector<8x128xf32>,
    %c0_i32_14 = arith.constant 0 : i32
    %18 = arith.cmpi eq, %arg1, %c0_i32_14 : i32
    %19 = arith.extui %18 : i1 to i32
    %c0_i32_15 = arith.constant 0 : i32
    %20 = arith.cmpi ne, %19, %c0_i32_15 : i32
    scf.if %20 {
      %c0_16 = arith.constant 0 : index
      %c0_17 = arith.constant 0 : index
      %21 = vector.load %arg6[%c0_16, %c0_17] : memref<1x128xf32, #tpu.memory_space<vmem>>, vector<1x128xf32>
      %c0_18 = arith.constant 0 : index
      %c0_19 = arith.constant 0 : index
      %22 = vector.load %arg7[%c0_18, %c0_19] : memref<1x128xf32, #tpu.memory_space<vmem>>, vector<1x128xf32>
      %c0_20 = arith.constant 0 : index
      %c0_21 = arith.constant 0 : index
      %23 = vector.load %arg8[%c0_20, %c0_21] : memref<1x128xf32, #tpu.memory_space<vmem>>, vector<1x128xf32>
      %c0_22 = arith.constant 0 : index
      %c0_23 = arith.constant 0 : index
      %24 = vector.load %arg10[%c0_22, %c0_23] : memref<8x128xf32, #tpu.memory_space<vmem>>, vector<8x128xf32>
      %25 = vector.broadcast %21 : vector<1x128xf32> to vector<8x128xf32>
      %26 = arith.addf %24, %25 : vector<8x128xf32>
      %27 = arith.addf %26, %3 : vector<8x128xf32>
      %cst_24 = arith.constant dense<0.000000e+00> : vector<8xf32>
      %28 = vector.multi_reduction <add>, %27, %cst_24 [1] : vector<8x128xf32> to vector<8xf32>
      %29 = vector.shape_cast %28 : vector<8xf32> to vector<8x1xf32>
      %cst_25 = arith.constant 3.125000e-02 : f32
      %30 = vector.broadcast %cst_25 : f32 to vector<8x1xf32>
      %31 = arith.mulf %29, %30 : vector<8x1xf32>
      %32 = vector.broadcast %31 : vector<8x1xf32> to vector<8x128xf32>
      %33 = arith.subf %27, %32 : vector<8x128xf32>
      %34 = arith.mulf %33, %33 : vector<8x128xf32>
      %cst_26 = arith.constant dense<0.000000e+00> : vector<8xf32>
      %35 = vector.multi_reduction <add>, %34, %cst_26 [1] : vector<8x128xf32> to vector<8xf32>
      %36 = vector.shape_cast %35 : vector<8xf32> to vector<8x1xf32>
      %37 = arith.mulf %31, %31 : vector<8x1xf32>
      %cst_27 = arith.constant 9.600000e+01 : f32
      %38 = vector.broadcast %cst_27 : f32 to vector<8x1xf32>
      %39 = arith.mulf %38, %37 : vector<8x1xf32>
      %40 = arith.subf %36, %39 : vector<8x1xf32>
      %cst_28 = arith.constant 3.125000e-02 : f32
      %41 = vector.broadcast %cst_28 : f32 to vector<8x1xf32>
      %42 = arith.mulf %40, %41 : vector<8x1xf32>
      %cst_29 = arith.constant 9.99999974E-6 : f32
      %43 = vector.broadcast %cst_29 : f32 to vector<8x1xf32>
      %44 = arith.addf %42, %43 : vector<8x1xf32>
      %45 = math.rsqrt %44 : vector<8x1xf32>
      %46 = vector.broadcast %45 : vector<8x1xf32> to vector<8x128xf32>
      %47 = arith.mulf %33, %46 : vector<8x128xf32>
      %48 = vector.broadcast %22 : vector<1x128xf32> to vector<8x128xf32>
      %49 = arith.mulf %47, %48 : vector<8x128xf32>
      %50 = vector.broadcast %23 : vector<1x128xf32> to vector<8x128xf32>
      %51 = arith.addf %49, %50 : vector<8x128xf32>
      %c0_30 = arith.constant 0 : index
      %c0_31 = arith.constant 0 : index
      %52 = vector.load %arg9[%c0_30, %c0_31] : memref<8x128xf32, #tpu.memory_space<vmem>>, vector<8x128xf32>
      tpu.vector_store %arg9[%c0_30, %c0_31], %51 {strides = array<i32>} : memref<8x128xf32, #tpu.memory_space<vmem>>, vector<8x128xf32>,
    } else {
    }
    return
  }
  func.func @transform_0(%arg0: i32, %arg1: i32) -> (i32, i32) {
    %c0_i32 = arith.constant 0 : i32
    %c0_i32_0 = arith.constant 0 : i32
    return %arg0, %c0_i32 : i32, i32
  }
  func.func @transform_1(%arg0: i32, %arg1: i32) -> (i32, i32) {
    %c0_i32 = arith.constant 0 : i32
    %c0_i32_0 = arith.constant 0 : i32
    return %c0_i32, %arg1 : i32, i32
  }
  func.func @transform_2(%arg0: i32, %arg1: i32) -> (i32, i32) {
    %c0_i32 = arith.constant 0 : i32
    %c0_i32_0 = arith.constant 0 : i32
    return %c0_i32, %arg1 : i32, i32
  }
  func.func @transform_3(%arg0: i32, %arg1: i32) -> (i32, i32) {
    %c0_i32 = arith.constant 0 : i32
    %c0_i32_0 = arith.constant 0 : i32
    return %arg1, %c0_i32 : i32, i32
  }
  func.func @transform_4(%arg0: i32, %arg1: i32) -> (i32, i32) {
    %c0_i32 = arith.constant 0 : i32
    %c0_i32_0 = arith.constant 0 : i32
    %c0_i32_1 = arith.constant 0 : i32
    return %c0_i32, %c0_i32_0 : i32, i32
  }
  func.func @transform_5(%arg0: i32, %arg1: i32) -> (i32, i32) {
    %c0_i32 = arith.constant 0 : i32
    %c0_i32_0 = arith.constant 0 : i32
    %c0_i32_1 = arith.constant 0 : i32
    return %c0_i32, %c0_i32_0 : i32, i32
  }
  func.func @transform_6(%arg0: i32, %arg1: i32) -> (i32, i32) {
    %c0_i32 = arith.constant 0 : i32
    %c0_i32_0 = arith.constant 0 : i32
    %c0_i32_1 = arith.constant 0 : i32
    return %c0_i32, %c0_i32_0 : i32, i32
  }
  func.func @transform_7(%arg0: i32, %arg1: i32) -> (i32, i32) {
    %c0_i32 = arith.constant 0 : i32
    %c0_i32_0 = arith.constant 0 : i32
    return %arg0, %c0_i32 : i32, i32
  }
}

</mosaic_0001>

<llo_original>
// kernel: tpu_custom_call.1
$region0: #{tpu_custom_call.1}
  #allocation0 [shape = 'u32[]', space=smem, size = 0x4, offset = 0x4, fixed_abs, tag = 'smem constant byte address 0x4 - core index']
  #allocation1 [shape = 'u32[144,128]{1,0:T(1,128)}', space=vmem, size = 0x12000, scoped, tag = 'internal scratch']
  #allocation2 [shape = 'f32[8,128]{1,0:T(8,128)}', space=vmem, size = 0x1000, scoped, tag = 'scratch operand']
  %s0 = inlined_call_operand.hbm [shape: f32[16,128], index: 0, kind: input, shape index: {}]
  %s1 = inlined_call_operand.hbm [shape: bf16[128,128], index: 1, kind: input, shape index: {}]
  %s2 = inlined_call_operand.vmem [shape: f32[1,128], index: 2, kind: input, shape index: {}]
  %s3 = inlined_call_operand.hbm [shape: bf16[128,128], index: 3, kind: input, shape index: {}]
  %s4 = inlined_call_operand.vmem [shape: f32[1,128], index: 4, kind: input, shape index: {}]
  %s5 = inlined_call_operand.vmem [shape: f32[1,128], index: 5, kind: input, shape index: {}]
  %s6 = inlined_call_operand.vmem [shape: f32[1,128], index: 6, kind: input, shape index: {}]
  %s7 = inlined_call_operand.hbm [shape: f32[16,128], index: 7, kind: output, shape index: {}]
  %s8 = sld [smem:[#allocation0]]
  $region81: #{tpu_custom_call.1} parent=0
    _
  %s10 = ssub.s32 1, %s8
  %s11 = scalar_select 0, %s10, %s8
  $region1: #{tpu_custom_call.1} parent=0
    #allocation3 [shape = 'u8[8192]{0}', space=vmem, size = 0x2000, scoped, tag = 'input window, operand 0']
    #allocation4 [shape = 's32[2]{0}', space=sflag, size = 0x8, scoped, tag = 'scoped memory for tpu_custom_call.1']
    #allocation5 [shape = 's32[2]{0}', space=sflag, size = 0x8, scoped, tag = 'scoped memory for tpu_custom_call.1']
    #allocation6 [shape = 'u8[32768]{0}', space=vmem, size = 0x8000, scoped, tag = 'input window, operand 1, single buffered']
    #allocation7 [shape = 's32[1]{0}', space=sflag, size = 0x4, scoped, tag = 'scoped memory for tpu_custom_call.1']
    #allocation8 [shape = 'u8[32768]{0}', space=vmem, size = 0x8000, scoped, tag = 'input window, operand 3, single buffered']
    #allocation9 [shape = 'u8[8192]{0}', space=vmem, size = 0x2000, scoped, tag = 'output window, operand 0']
    %12 = vsyncpa [#allocation4], 0
    %s13 = scalar_lea.sflag [#allocation4], 1
    %14 = vsyncpa %s13, 0
    %15 = vsyncpa [#allocation7], 0
    %16 = vsyncpa [#allocation5], 0
    %s17 = scalar_lea.sflag [#allocation5], 1
    %18 = vsyncpa %s17, 0
    loop: start=0, step=1, limit=4
    $region2: #{tpu_custom_call.1} parent=1 // loop_pre_header
      _
    $region3: #{tpu_custom_call.1} parent=1 // loop_header
      %s20 = sphi 0, %s24
      %p21 = scmp.ge.s32.totalorder %s20, 4
      %s27 = sphi 0, %s39
      %s28 = sphi 0, %s35
      %s29 = sphi 0, %s27
      %s30 = sphi 0, %s28
      %s31 = sphi 0, %s29
      %s32 = sphi 0, %s30
      %s42 = sphi 0, %s44
      %s45 = sphi 0, %s42
      %s46 = sphi 0, %s45
      %s62 = sphi 0, %s46
      %s68 = sphi 0, %s70
      %s71 = sphi 0, %s68
      %s72 = sphi 0, %s71
      %s88 = sphi 0, %s72
      %s94 = sphi 0, %s96
      %s97 = sphi 0, %s94
      %s98 = sphi 0, %s97
      %s114 = sphi 0, %s98
      %s120 = sphi 0, %s122
      %s123 = sphi 0, %s120
      %s124 = sphi 0, %s123
      %s140 = sphi 0, %s124
      %s144 = sphi 0, %s144
      %s146 = sphi 0, %s144
      %s147 = sphi 0, %s146
      %s161 = sphi 0, %s147
      %s165 = sphi 0, %s165
      %s167 = sphi 0, %s165
      %s168 = sphi 0, %s167
      %s182 = sphi 0, %s168
      %s186 = sphi 0, %s186
      %s188 = sphi 0, %s186
      %s189 = sphi 0, %s188
      %s203 = sphi 0, %s189
      %s209 = sphi 0, %s211
      %s212 = sphi 0, %s209
      %s213 = sphi 0, %s212
      %s229 = sphi 0, %s213
    $region4: #{tpu_custom_call.1} parent=1 // loop_header_branch
      %23 = sbr.rel (%p21) target = $region8
    $region5: #{tpu_custom_call.1} parent=1 // loop_body
      %s25 = ssub.s32 %s20, 1
      %s26 = ssub.s32 %s20, 2
      %s33 = sadd.s32 1, %s28
      %p34 = scmp.ge.s32.totalorder %s33, 1
      %s35 = scalar_select %p34, 0, %s33
      %s36 = sadd.s32 1, %s27
      %s37 = scalar_select %p34, %s36, %s27
      %p38 = scmp.ge.s32.totalorder %s37, 2
      %s39 = scalar_select %p38, 0, %s37
      %s40 = ssub.s32 %s27, %s39
      %p41 = scmp.eq.s32.totalorder %s40, 0
      %s43 = sadd.s32 %s42, 1
      %s44 = scalar_select %p41, %s42, %s43
      %p47 = pneg %p41
      %p48 = scmp.eq.s32.totalorder %s20, 1
      %p49 = por %p47, %p48
      %p50 = scmp.ne.s32.totalorder %s42, %s45
      %p51 = scmp.eq.s32.totalorder %s20, 0
      %p52 = por %p50, %p51
      %p53 = scmp.ne.s32.totalorder %s42, %s45
      %p54 = scmp.eq.s32.totalorder %s25, 1
      %p55 = por %p53, %p54
      %p56 = scmp.ne.s32.totalorder %s45, %s46
      %p57 = scmp.eq.s32.totalorder %s25, 0
      %p58 = por %p56, %p57
      %p59 = scmp.ne.s32.totalorder %s45, %s46
      %p60 = scmp.eq.s32.totalorder %s26, 1
      %p61 = por %p59, %p60
      %p63 = scmp.ne.s32.totalorder %s46, %s62
      %p64 = scmp.eq.s32.totalorder %s26, 0
      %p65 = por %p63, %p64
      %s66 = ssub.s32 %s28, %s35
      %p67 = scmp.eq.s32.totalorder %s66, 0
      %s69 = sadd.s32 %s68, 1
      %s70 = scalar_select %p67, %s68, %s69
      %p73 = pneg %p67
      %p74 = scmp.eq.s32.totalorder %s20, 1
      %p75 = por %p73, %p74
      %p76 = scmp.ne.s32.totalorder %s68, %s71
      %p77 = scmp.eq.s32.totalorder %s20, 0
      %p78 = por %p76, %p77
      %p79 = scmp.ne.s32.totalorder %s68, %s71
      %p80 = scmp.eq.s32.totalorder %s25, 1
      %p81 = por %p79, %p80
      %p82 = scmp.ne.s32.totalorder %s71, %s72
      %p83 = scmp.eq.s32.totalorder %s25, 0
      %p84 = por %p82, %p83
      %p85 = scmp.ne.s32.totalorder %s71, %s72
      %p86 = scmp.eq.s32.totalorder %s26, 1
      %p87 = por %p85, %p86
      %p89 = scmp.ne.s32.totalorder %s72, %s88
      %p90 = scmp.eq.s32.totalorder %s26, 0
      %p91 = por %p89, %p90
      %s92 = ssub.s32 %s28, %s35
      %p93 = scmp.eq.s32.totalorder %s92, 0
      %s95 = sadd.s32 %s94, 1
      %s96 = scalar_select %p93, %s94, %s95
      %p99 = pneg %p93
      %p100 = scmp.eq.s32.totalorder %s20, 1
      %p101 = por %p99, %p100
      %p102 = scmp.ne.s32.totalorder %s94, %s97
      %p103 = scmp.eq.s32.totalorder %s20, 0
      %p104 = por %p102, %p103
      %p105 = scmp.ne.s32.totalorder %s94, %s97
      %p106 = scmp.eq.s32.totalorder %s25, 1
      %p107 = por %p105, %p106
      %p108 = scmp.ne.s32.totalorder %s97, %s98
      %p109 = scmp.eq.s32.totalorder %s25, 0
      %p110 = por %p108, %p109
      %p111 = scmp.ne.s32.totalorder %s97, %s98
      %p112 = scmp.eq.s32.totalorder %s26, 1
      %p113 = por %p111, %p112
      %p115 = scmp.ne.s32.totalorder %s98, %s114
      %p116 = scmp.eq.s32.totalorder %s26, 0
      %p117 = por %p115, %p116
      %s118 = ssub.s32 %s28, %s35
      %p119 = scmp.eq.s32.totalorder %s118, 0
      %s121 = sadd.s32 %s120, 1
      %s122 = scalar_select %p119, %s120, %s121
      %p125 = pneg %p119
      %p126 = scmp.eq.s32.totalorder %s20, 1
      %p127 = por %p125, %p126
      %p128 = scmp.ne.s32.totalorder %s120, %s123
      %p129 = scmp.eq.s32.totalorder %s20, 0
      %p130 = por %p128, %p129
      %p131 = scmp.ne.s32.totalorder %s120, %s123
      %p132 = scmp.eq.s32.totalorder %s25, 1
      %p133 = por %p131, %p132
      %p134 = scmp.ne.s32.totalorder %s123, %s124
      %p135 = scmp.eq.s32.totalorder %s25, 0
      %p136 = por %p134, %p135
      %p137 = scmp.ne.s32.totalorder %s123, %s124
      %p138 = scmp.eq.s32.totalorder %s26, 1
      %p139 = por %p137, %p138
      %p141 = scmp.ne.s32.totalorder %s124, %s140
      %p142 = scmp.eq.s32.totalorder %s26, 0
      %p143 = por %p141, %p142
      %s145 = sadd.s32 %s144, 1
      %p148 = scmp.eq.s32.totalorder %s20, 1
      %p149 = scmp.ne.s32.totalorder %s144, %s146
      %p150 = scmp.eq.s32.totalorder %s20, 0
      %p151 = por %p149, %p150
      %p152 = scmp.ne.s32.totalorder %s144, %s146
      %p153 = scmp.eq.s32.totalorder %s25, 1
      %p154 = por %p152, %p153
      %p155 = scmp.ne.s32.totalorder %s146, %s147
      %p156 = scmp.eq.s32.totalorder %s25, 0
      %p157 = por %p155, %p156
      %p158 = scmp.ne.s32.totalorder %s146, %s147
      %p159 = scmp.eq.s32.totalorder %s26, 1
      %p160 = por %p158, %p159
      %p162 = scmp.ne.s32.totalorder %s147, %s161
      %p163 = scmp.eq.s32.totalorder %s26, 0
      %p164 = por %p162, %p163
      %s166 = sadd.s32 %s165, 1
      %p169 = scmp.eq.s32.totalorder %s20, 1
      %p170 = scmp.ne.s32.totalorder %s165, %s167
      %p171 = scmp.eq.s32.totalorder %s20, 0
      %p172 = por %p170, %p171
      %p173 = scmp.ne.s32.totalorder %s165, %s167
      %p174 = scmp.eq.s32.totalorder %s25, 1
      %p175 = por %p173, %p174
      %p176 = scmp.ne.s32.totalorder %s167, %s168
      %p177 = scmp.eq.s32.totalorder %s25, 0
      %p178 = por %p176, %p177
      %p179 = scmp.ne.s32.totalorder %s167, %s168
      %p180 = scmp.eq.s32.totalorder %s26, 1
      %p181 = por %p179, %p180
      %p183 = scmp.ne.s32.totalorder %s168, %s182
      %p184 = scmp.eq.s32.totalorder %s26, 0
      %p185 = por %p183, %p184
      %s187 = sadd.s32 %s186, 1
      %p190 = scmp.eq.s32.totalorder %s20, 1
      %p191 = scmp.ne.s32.totalorder %s186, %s188
      %p192 = scmp.eq.s32.totalorder %s20, 0
      %p193 = por %p191, %p192
      %p194 = scmp.ne.s32.totalorder %s186, %s188
      %p195 = scmp.eq.s32.totalorder %s25, 1
      %p196 = por %p194, %p195
      %p197 = scmp.ne.s32.totalorder %s188, %s189
      %p198 = scmp.eq.s32.totalorder %s25, 0
      %p199 = por %p197, %p198
      %p200 = scmp.ne.s32.totalorder %s188, %s189
      %p201 = scmp.eq.s32.totalorder %s26, 1
      %p202 = por %p200, %p201
      %p204 = scmp.ne.s32.totalorder %s189, %s203
      %p205 = scmp.eq.s32.totalorder %s26, 0
      %p206 = por %p204, %p205
      %s207 = ssub.s32 %s27, %s39
      %p208 = scmp.eq.s32.totalorder %s207, 0
      %s210 = sadd.s32 %s209, 1
      %s211 = scalar_select %p208, %s209, %s210
      %p214 = pneg %p208
      %p215 = scmp.eq.s32.totalorder %s20, 1
      %p216 = por %p214, %p215
      %p217 = scmp.ne.s32.totalorder %s209, %s212
      %p218 = scmp.eq.s32.totalorder %s20, 0
      %p219 = por %p217, %p218
      %p220 = scmp.ne.s32.totalorder %s209, %s212
      %p221 = scmp.eq.s32.totalorder %s25, 1
      %p222 = por %p220, %p221
      %p223 = scmp.ne.s32.totalorder %s212, %s213
      %p224 = scmp.eq.s32.totalorder %s25, 0
      %p225 = por %p223, %p224
      %p226 = scmp.ne.s32.totalorder %s212, %s213
      %p227 = scmp.eq.s32.totalorder %s26, 1
      %p228 = por %p226, %p227
      %p230 = scmp.ne.s32.totalorder %s213, %s229
      %p231 = scmp.eq.s32.totalorder %s26, 0
      %p232 = por %p230, %p231
      %p233 = scmp.le.s32.totalorder 1, %s20
      %p234 = scmp.lt.s32.totalorder %s20, 3
      %p235 = pnand %p233, %p234
      %p236 = pneg %p235
      // Predicated region
      $region9: #{tpu_custom_call.1} parent=5 // pred_check
        _
      $region10: #{tpu_custom_call.1} parent=5 // pred_check_branch
        %238 = sbr.rel (%p235) target = $region12
      $region11: #{tpu_custom_call.1} parent=5 // pred_region
        %s239 = ssub.s32 %s20, 1
        // Predicated region
        $region13: #{tpu_custom_call.1} parent=11 // pred_check
          %p240 = pneg %p84
        $region14: #{tpu_custom_call.1} parent=11 // pred_check_branch
          %242 = sbr.rel (%p240) target = $region16
        $region15: #{tpu_custom_call.1} parent=11 // pred_region
          %s244 = ssub.s32 1024, 1024
          %245 = vsyncadd [#allocation7], %s244
          %s246 = smul.addr %s30, 64
          %s247 = scalar_lea.hbm %s1, %s246
          %s248 = sshll.u32 [#allocation6], 4
          %s249 = int_to_ptr.vmem [resolvable:$true] %s248
          %254 = dma.hbm_to_vmem [thread:$0]  %s247, 1024, %s249, [#allocation7], 64, 64, 4
        $region16: #{tpu_custom_call.1} parent=11 // pred_fallthru
          _
        // Predicated region
        $region17: #{tpu_custom_call.1} parent=11 // pred_check
          %p255 = pneg %p110
        $region18: #{tpu_custom_call.1} parent=11 // pred_check_branch
          %257 = sbr.rel (%p255) target = $region20
        $region19: #{tpu_custom_call.1} parent=11 // pred_region
          %p258 = scmp.lt.s32.totalorder %s30, 0
          %s259 = scalar_select %p258, %s30, 0
          %s260 = scalar_lea.vmem %s2, %s259
        $region20: #{tpu_custom_call.1} parent=11 // pred_fallthru
          _
        // Predicated region
        $region21: #{tpu_custom_call.1} parent=11 // pred_check
          %p261 = pneg %p136
        $region22: #{tpu_custom_call.1} parent=11 // pred_check_branch
          %263 = sbr.rel (%p261) target = $region24
        $region23: #{tpu_custom_call.1} parent=11 // pred_region
          %s264 = smul.u32 16, %s30
          %s266 = ssub.s32 1024, 1024
          %267 = vsyncadd [#allocation7], %s266
          %s268 = smul.addr %s264, 64
          %s269 = scalar_lea.hbm %s3, %s268
          %s270 = sshll.u32 [#allocation8], 4
          %s271 = int_to_ptr.vmem [resolvable:$true] %s270
          %276 = dma.hbm_to_vmem [thread:$0]  %s269, 1024, %s271, [#allocation7], 64, 64, 4
        $region24: #{tpu_custom_call.1} parent=11 // pred_fallthru
          _
        // Predicated region
        $region25: #{tpu_custom_call.1} parent=11 // pred_check
          %p277 = pneg %p157
        $region26: #{tpu_custom_call.1} parent=11 // pred_check_branch
          %279 = sbr.rel (%p277) target = $region28
        $region27: #{tpu_custom_call.1} parent=11 // pred_region
          _
        $region28: #{tpu_custom_call.1} parent=11 // pred_fallthru
          _
        // Predicated region
        $region29: #{tpu_custom_call.1} parent=11 // pred_check
          %p280 = pneg %p178
        $region30: #{tpu_custom_call.1} parent=11 // pred_check_branch
          %282 = sbr.rel (%p280) target = $region32
        $region31: #{tpu_custom_call.1} parent=11 // pred_region
          _
        $region32: #{tpu_custom_call.1} parent=11 // pred_fallthru
          _
        // Predicated region
        $region33: #{tpu_custom_call.1} parent=11 // pred_check
          %p283 = pneg %p199
        $region34: #{tpu_custom_call.1} parent=11 // pred_check_branch
          %285 = sbr.rel (%p283) target = $region36
        $region35: #{tpu_custom_call.1} parent=11 // pred_region
          _
        $region36: #{tpu_custom_call.1} parent=11 // pred_fallthru
          _
      $region12: #{tpu_custom_call.1} parent=5 // pred_fallthru
        _
      %p286 = scmp.lt.s32.totalorder %s20, 2
      // Predicated region
      $region37: #{tpu_custom_call.1} parent=5 // pred_check
        %p287 = pneg %p286
      $region38: #{tpu_custom_call.1} parent=5 // pred_check_branch
        %289 = sbr.rel (%p287) target = $region40
      $region39: #{tpu_custom_call.1} parent=5 // pred_region
        // Predicated region
        $region41: #{tpu_custom_call.1} parent=39 // pred_check
          %p290 = pneg %p52
        $region42: #{tpu_custom_call.1} parent=39 // pred_check_branch
          %292 = sbr.rel (%p290) target = $region44
        $region43: #{tpu_custom_call.1} parent=39 // pred_region
          %s293 = sand.u32 %s42, 1
          %s294 = scalar_lea.sflag [#allocation4], %s293
          %s295 = sand.u32 %s42, 1
          %s296 = smul.addr %s295, 8
          %s297 = scalar_lea.vmem [#allocation3], %s296
          %s299 = ssub.s32 128, 128
          %300 = vsyncadd %s294, %s299
          %s301 = smul.addr %s27, 128
          %s302 = scalar_lea.hbm %s0, %s301
          %s304 = sshll.u32 %s297, 4
          %s305 = int_to_ptr.vmem [resolvable:$true] %s304
          %307 = dma.hbm_to_vmem [thread:$0]  %s302, 128, %s305, %s294
        $region44: #{tpu_custom_call.1} parent=39 // pred_fallthru
          _
      $region40: #{tpu_custom_call.1} parent=5 // pred_fallthru
        _
      %p308 = scmp.le.s32.totalorder 1, %s20
      %p309 = scmp.lt.s32.totalorder %s20, 3
      %p310 = pnand %p308, %p309
      %p311 = pneg %p310
      // Predicated region
      $region45: #{tpu_custom_call.1} parent=5 // pred_check
        _
      $region46: #{tpu_custom_call.1} parent=5 // pred_check_branch
        %313 = sbr.rel (%p310) target = $region48
      $region47: #{tpu_custom_call.1} parent=5 // pred_region
        %s314 = ssub.s32 %s20, 1
        %s315 = sand.u32 %s45, 1
        %s316 = scalar_lea.sflag [#allocation4], %s315
        %s317 = sand.u32 %s45, 1
        %s318 = smul.addr %s317, 8
        %s319 = scalar_lea.vmem [#allocation3], %s318
        // Predicated region
        $region49: #{tpu_custom_call.1} parent=47 // pred_check
          %p320 = pneg %p58
        $region50: #{tpu_custom_call.1} parent=47 // pred_check_branch
          %322 = sbr.rel (%p320) target = $region52
        $region51: #{tpu_custom_call.1} parent=47 // pred_region
          %323 = dma.done %s316, 128
        $region52: #{tpu_custom_call.1} parent=47 // pred_fallthru
          _
        // Predicated region
        $region53: #{tpu_custom_call.1} parent=47 // pred_check
          %p324 = pneg %p84
        $region54: #{tpu_custom_call.1} parent=47 // pred_check_branch
          %326 = sbr.rel (%p324) target = $region56
        $region55: #{tpu_custom_call.1} parent=47 // pred_region
          %327 = dma.done [#allocation7], 1024
        $region56: #{tpu_custom_call.1} parent=47 // pred_fallthru
          _
        // Predicated region
        $region57: #{tpu_custom_call.1} parent=47 // pred_check
          %p328 = pneg %p136
        $region58: #{tpu_custom_call.1} parent=47 // pred_check_branch
          %330 = sbr.rel (%p328) target = $region60
        $region59: #{tpu_custom_call.1} parent=47 // pred_region
          %331 = dma.done [#allocation7], 1024
        $region60: #{tpu_custom_call.1} parent=47 // pred_fallthru
          _
        %s332 = sand.u32 %s45, 1
        %s333 = scalar_lea.sflag [#allocation4], %s332
        %s334 = sand.u32 %s45, 1
        %s335 = smul.addr %s334, 8
        %s336 = scalar_lea.vmem [#allocation3], %s335
        %p337 = pneg %p58
        %p338 = pneg %p55
        %p339 = pneg %p84
        %p340 = pneg %p81
        %p341 = scmp.lt.s32.totalorder %s30, 0
        %s342 = scalar_select %p341, %s30, 0
        %s343 = scalar_lea.vmem %s2, %s342
        %p344 = pneg %p110
        %p345 = pneg %p107
        %p346 = pneg %p136
        %p347 = pneg %p133
        %p348 = pneg %p157
        %p349 = pneg %p154
        %p350 = pneg %p178
        %p351 = pneg %p175
        %p352 = pneg %p199
        %p353 = pneg %p196
        %p354 = pneg %p225
        %p355 = pneg %p222
        %s356 = sand.u32 %s212, 1
        %s357 = scalar_lea.sflag [#allocation5], %s356
        %s358 = sand.u32 %s212, 1
        %s359 = smul.addr %s358, 8
        %s360 = scalar_lea.vmem [#allocation9], %s359
        %p361 = scmp.lt.s32.totalorder %s30, 0
        %s362 = scalar_select %p361, %s30, 0
        %s363 = scalar_lea.vmem %s2, %s362
        %s364 = smul.u32 16, %s30
        %p366 = scmp.eq.s32.totalorder %s30, 0
        // Predicated region
        $region61: #{tpu_custom_call.1} parent=47 // pred_check
          %p367 = pneg %p366
        $region62: #{tpu_custom_call.1} parent=47 // pred_check_branch
          %369 = sbr.rel (%p367) target = $region64
        $region63: #{tpu_custom_call.1} parent=47 // pred_region
          %370 = vst [vmem:[#allocation2] sm:$0xff] 0.0
        $region64: #{tpu_custom_call.1} parent=47 // pred_fallthru
          _
        %v371 = vld [vmem:[%s319] sm:$0xff]
        %v372 = vld [vmem:[%s363] sm:$0x1]
        %v373 = vpack.c.bf16 %v371, %v371
        %v374 = vld [vmem:[#allocation6] sm:$0xf]
        %v375 = vld [vmem:[#allocation6 + $0x4] sm:$0xf]
        %v376 = vld [vmem:[#allocation6 + $0x8] sm:$0xf]
        %v377 = vld [vmem:[#allocation6 + $0xc] sm:$0xf]
        %v378 = vld [vmem:[#allocation6 + $0x10] sm:$0xf]
        %v379 = vld [vmem:[#allocation6 + $0x14] sm:$0xf]
        %v380 = vld [vmem:[#allocation6 + $0x18] sm:$0xf]
        %v381 = vld [vmem:[#allocation6 + $0x1c] sm:$0xf]
        %v382 = vld [vmem:[#allocation6 + $0x20] sm:$0xf]
        %v383 = vld [vmem:[#allocation6 + $0x24] sm:$0xf]
        %v384 = vld [vmem:[#allocation6 + $0x28] sm:$0xf]
        %v385 = vld [vmem:[#allocation6 + $0x2c] sm:$0xf]
        %v386 = vld [vmem:[#allocation6 + $0x30] sm:$0xf]
        %v387 = vld [vmem:[#allocation6 + $0x34] sm:$0xf]
        %v388 = vld [vmem:[#allocation6 + $0x38] sm:$0xf]
        %v389 = vld [vmem:[#allocation6 + $0x3c] sm:$0xf]
        %v391 = vlaneseq
        %v392 = vshrl.u32 %v391, 7
        %v393 = vsub.s32 0, %v392
        %v394 = vrot.slane %v372, %v393
        %v412 = vunpack.c.l.b16 %v374
        %v413 = vunpack.c.l.b16 %v375
        %v414 = vunpack.c.l.b16 %v376
        %v415 = vunpack.c.l.b16 %v377
        %v416 = vunpack.c.l.b16 %v378
        %v417 = vunpack.c.l.b16 %v379
        %v418 = vunpack.c.l.b16 %v380
        %v419 = vunpack.c.l.b16 %v381
        %v420 = vunpack.c.l.b16 %v382
        %v421 = vunpack.c.l.b16 %v383
        %v422 = vunpack.c.l.b16 %v384
        %v423 = vunpack.c.l.b16 %v385
        %v424 = vunpack.c.l.b16 %v386
        %v425 = vunpack.c.l.b16 %v387
        %v426 = vunpack.c.l.b16 %v388
        %v427 = vunpack.c.l.b16 %v389
        %v428 = vpack.c.b16 %v413, %v412
        %v429 = vpack.c.b16 %v415, %v414
        %v430 = vpack.c.b16 %v417, %v416
        %v431 = vpack.c.b16 %v419, %v418
        %v432 = vpack.c.b16 %v421, %v420
        %v433 = vpack.c.b16 %v423, %v422
        %v434 = vpack.c.b16 %v425, %v424
        %v435 = vpack.c.b16 %v427, %v426
        %444 = vmatprep.subr.bf16.mxu0 0
        %445 = vmatpush1.bf16.msra.mxu0 %v428
        %446 = vmatprep.subr.bf16.mxu0 0
        %447 = vmatpush1.bf16.msra.mxu0 %v429
        %448 = vmatprep.subr.bf16.mxu0 0
        %449 = vmatpush1.bf16.msra.mxu0 %v430
        %450 = vmatprep.subr.bf16.mxu0 0
        %451 = vmatpush1.bf16.msra.mxu0 %v431
        %452 = vmatprep.subr.bf16.mxu0 0
        %453 = vmatpush1.bf16.msra.mxu0 %v432
        %454 = vmatprep.subr.bf16.mxu0 0
        %455 = vmatpush1.bf16.msra.mxu0 %v433
        %456 = vmatprep.subr.bf16.mxu0 0
        %457 = vmatpush1.bf16.msra.mxu0 %v434
        %458 = vmatprep.subr.bf16.mxu0 0
        %459 = vmatpush1.bf16.msra.mxu0 %v435
        %460 = vmatprep.subr.bf16.mxu0 0
        %461 = vmatpush1.bf16.msra.mxu0 0
        %462 = vmatprep.subr.bf16.mxu0 0
        %463 = vmatpush1.bf16.msra.mxu0 0
        %464 = vmatprep.subr.bf16.mxu0 0
        %465 = vmatpush1.bf16.msra.mxu0 0
        %466 = vmatprep.subr.bf16.mxu0 0
        %467 = vmatpush1.bf16.msra.mxu0 0
        %468 = vmatprep.subr.bf16.mxu0 0
        %469 = vmatpush1.bf16.msra.mxu0 0
        %470 = vmatprep.subr.bf16.mxu0 0
        %471 = vmatpush1.bf16.msra.mxu0 0
        %472 = vmatprep.subr.bf16.mxu0 0
        %473 = vmatpush1.bf16.msra.mxu0 0
        %474 = vmatprep.subr.bf16.mxu0 0
        %475 = vmatpush1.bf16.msra.mxu0 0
        %476 = vmatprep.mubr.bf16.mxu0 0
        %477 = vmatmul.mubr.bf16.gmra.mrb[0].mxu0 %v373
        %v478 = vpop.f32.mrb[0].mxu0
        %v479 = vadd.f32 %v394, %v478
        %v480 = vpop.f32.mrb[0].mxu0
        %v481 = vpop.f32.mrb[0].mxu0
        %v482 = vpop.f32.mrb[0].mxu0
        %483 = vdwg.mxu0
        %v484 = vmax.f32 %v479, 0.0
        %v485 = vld [vmem:[#allocation2] sm:$0xff]
        %v486 = vpack.c.bf16 %v484, %v484
        %v487 = vld [vmem:[#allocation8] sm:$0xf]
        %v488 = vld [vmem:[#allocation8 + $0x4] sm:$0xf]
        %v489 = vld [vmem:[#allocation8 + $0x8] sm:$0xf]
        %v490 = vld [vmem:[#allocation8 + $0xc] sm:$0xf]
        %v491 = vld [vmem:[#allocation8 + $0x10] sm:$0xf]
        %v492 = vld [vmem:[#allocation8 + $0x14] sm:$0xf]
        %v493 = vld [vmem:[#allocation8 + $0x18] sm:$0xf]
        %v494 = vld [vmem:[#allocation8 + $0x1c] sm:$0xf]
        %v495 = vld [vmem:[#allocation8 + $0x20] sm:$0xf]
        %v496 = vld [vmem:[#allocation8 + $0x24] sm:$0xf]
        %v497 = vld [vmem:[#allocation8 + $0x28] sm:$0xf]
        %v498 = vld [vmem:[#allocation8 + $0x2c] sm:$0xf]
        %v499 = vld [vmem:[#allocation8 + $0x30] sm:$0xf]
        %v500 = vld [vmem:[#allocation8 + $0x34] sm:$0xf]
        %v501 = vld [vmem:[#allocation8 + $0x38] sm:$0xf]
        %v502 = vld [vmem:[#allocation8 + $0x3c] sm:$0xf]
        %v519 = vunpack.c.l.b16 %v487
        %v520 = vunpack.c.l.b16 %v488
        %v521 = vunpack.c.l.b16 %v489
        %v522 = vunpack.c.l.b16 %v490
        %v523 = vunpack.c.l.b16 %v491
        %v524 = vunpack.c.l.b16 %v492
        %v525 = vunpack.c.l.b16 %v493
        %v526 = vunpack.c.l.b16 %v494
        %v527 = vunpack.c.l.b16 %v495
        %v528 = vunpack.c.l.b16 %v496
        %v529 = vunpack.c.l.b16 %v497
        %v530 = vunpack.c.l.b16 %v498
        %v531 = vunpack.c.l.b16 %v499
        %v532 = vunpack.c.l.b16 %v500
        %v533 = vunpack.c.l.b16 %v501
        %v534 = vunpack.c.l.b16 %v502
        %v535 = vpack.c.b16 %v520, %v519
        %v536 = vpack.c.b16 %v522, %v521
        %v537 = vpack.c.b16 %v524, %v523
        %v538 = vpack.c.b16 %v526, %v525
        %v539 = vpack.c.b16 %v528, %v527
        %v540 = vpack.c.b16 %v530, %v529
        %v541 = vpack.c.b16 %v532, %v531
        %v542 = vpack.c.b16 %v534, %v533
        %551 = vmatprep.subr.bf16.mxu0 0
        %552 = vmatpush1.bf16.msra.mxu0 %v535
        %553 = vmatprep.subr.bf16.mxu0 0
        %554 = vmatpush1.bf16.msra.mxu0 %v536
        %555 = vmatprep.subr.bf16.mxu0 0
        %556 = vmatpush1.bf16.msra.mxu0 %v537
        %557 = vmatprep.subr.bf16.mxu0 0
        %558 = vmatpush1.bf16.msra.mxu0 %v538
        %559 = vmatprep.subr.bf16.mxu0 0
        %560 = vmatpush1.bf16.msra.mxu0 %v539
        %561 = vmatprep.subr.bf16.mxu0 0
        %562 = vmatpush1.bf16.msra.mxu0 %v540
        %563 = vmatprep.subr.bf16.mxu0 0
        %564 = vmatpush1.bf16.msra.mxu0 %v541
        %565 = vmatprep.subr.bf16.mxu0 0
        %566 = vmatpush1.bf16.msra.mxu0 %v542
        %567 = vmatprep.subr.bf16.mxu0 0
        %568 = vmatpush1.bf16.msra.mxu0 0
        %569 = vmatprep.subr.bf16.mxu0 0
        %570 = vmatpush1.bf16.msra.mxu0 0
        %571 = vmatprep.subr.bf16.mxu0 0
        %572 = vmatpush1.bf16.msra.mxu0 0
        %573 = vmatprep.subr.bf16.mxu0 0
        %574 = vmatpush1.bf16.msra.mxu0 0
        %575 = vmatprep.subr.bf16.mxu0 0
        %576 = vmatpush1.bf16.msra.mxu0 0
        %577 = vmatprep.subr.bf16.mxu0 0
        %578 = vmatpush1.bf16.msra.mxu0 0
        %579 = vmatprep.subr.bf16.mxu0 0
        %580 = vmatpush1.bf16.msra.mxu0 0
        %581 = vmatprep.subr.bf16.mxu0 0
        %582 = vmatpush1.bf16.msra.mxu0 0
        %583 = vmatprep.mubr.bf16.mxu0 0
        %584 = vmatmul.mubr.bf16.gmra.mrb[0].mxu0 %v486
        %v585 = vpop.f32.mrb[0].mxu0
        %v586 = vadd.f32 0.0, %v585
        %v587 = vpop.f32.mrb[0].mxu0
        %v588 = vpop.f32.mrb[0].mxu0
        %v589 = vpop.f32.mrb[0].mxu0
        %590 = vdwg.mxu0
        %v591 = vadd.f32 %v485, %v586
        %592 = vst [vmem:[#allocation2] sm:$0xff] %v591
        // Predicated region
        $region65: #{tpu_custom_call.1} parent=47 // pred_check
          %p593 = pneg %p366
        $region66: #{tpu_custom_call.1} parent=47 // pred_check_branch
          %595 = sbr.rel (%p593) target = $region68
        $region67: #{tpu_custom_call.1} parent=47 // pred_region
          %v596 = vld [vmem:[%s4] sm:$0x1]
          %v597 = vld [vmem:[%s5] sm:$0x1]
          %v598 = vld [vmem:[%s6] sm:$0x1]
          %v599 = vld [vmem:[#allocation2] sm:$0xff]
          %v601 = vlaneseq
          %v602 = vshrl.u32 %v601, 7
          %v603 = vsub.s32 0, %v602
          %v604 = vrot.slane %v596, %v603
          %v606 = vadd.f32 %v599, %v604
          %v607 = vadd.f32 %v606, %v371
          %608 = vadd.xlane.f32.xlu0 %v607
          %v609 = vpop.xlane.xlu0 %608
          %v610 = vmul.f32 %v609, 0.03125
          %v611 = vsub.f32 %v607, %v610
          %v612 = vmul.f32 %v611, %v611
          %613 = vadd.xlane.f32.xlu0 %v612
          %v614 = vpop.xlane.xlu0 %613
          %v615 = vmul.f32 %v610, %v610
          %v616 = vmul.f32 %v615, 96.0
          %v617 = vsub.f32 %v614, %v616
          %v618 = vmul.f32 %v617, 0.03125
          %v619 = vadd.f32 %v618, 1e-05
          %v620 = vrsqrt.pop %v619
          %v621 = vmul.f32 %v611, %v620
          %v623 = vlaneseq
          %v624 = vshrl.u32 %v623, 7
          %v625 = vsub.s32 0, %v624
          %v626 = vrot.slane %v597, %v625
          %v628 = vmul.f32 %v621, %v626
          %v630 = vlaneseq
          %v631 = vshrl.u32 %v630, 7
          %v632 = vsub.s32 0, %v631
          %v633 = vrot.slane %v598, %v632
          %v635 = vadd.f32 %v628, %v633
          %636 = vst [vmem:[%s360] sm:$0xff] %v635
        $region68: #{tpu_custom_call.1} parent=47 // pred_fallthru
          _
        %s637 = sand.u32 %s212, 1
        %s638 = scalar_lea.sflag [#allocation5], %s637
        %s639 = sand.u32 %s212, 1
        %s640 = smul.addr %s639, 8
        %s641 = scalar_lea.vmem [#allocation9], %s640
        // Predicated region
        $region69: #{tpu_custom_call.1} parent=47 // pred_check
          %p642 = pneg %p222
        $region70: #{tpu_custom_call.1} parent=47 // pred_check_branch
          %644 = sbr.rel (%p642) target = $region72
        $region71: #{tpu_custom_call.1} parent=47 // pred_region
          %s646 = ssub.s32 128, 128
          %647 = vsyncadd %s638, %s646
          %s648 = smul.addr %s29, 128
          %s649 = scalar_lea.hbm %s7, %s648
          %s651 = sshll.u32 %s641, 4
          %s652 = int_to_ptr.vmem [resolvable:$true] %s651
          %654 = dma.vmem_to_hbm [thread:$0]  %s652, 128, %s649, %s638
        $region72: #{tpu_custom_call.1} parent=47 // pred_fallthru
          _
      $region48: #{tpu_custom_call.1} parent=5 // pred_fallthru
        _
      %p655 = scmp.le.s32.totalorder 2, %s20
      // Predicated region
      $region73: #{tpu_custom_call.1} parent=5 // pred_check
        %p656 = pneg %p655
      $region74: #{tpu_custom_call.1} parent=5 // pred_check_branch
        %658 = sbr.rel (%p656) target = $region76
      $region75: #{tpu_custom_call.1} parent=5 // pred_region
        %s659 = ssub.s32 %s20, 2
        // Predicated region
        $region77: #{tpu_custom_call.1} parent=75 // pred_check
          %p660 = pneg %p228
        $region78: #{tpu_custom_call.1} parent=75 // pred_check_branch
          %662 = sbr.rel (%p660) target = $region80
        $region79: #{tpu_custom_call.1} parent=75 // pred_region
          %s663 = sand.u32 %s213, 1
          %s664 = scalar_lea.sflag [#allocation5], %s663
          %s665 = sand.u32 %s213, 1
          %s666 = smul.addr %s665, 8
          %s667 = scalar_lea.vmem [#allocation9], %s666
          %668 = dma.done %s664, 128
        $region80: #{tpu_custom_call.1} parent=75 // pred_fallthru
          _
      $region76: #{tpu_custom_call.1} parent=5 // pred_fallthru
        _
    $region6: #{tpu_custom_call.1} parent=1 // loop_footer
      %s24 = sadd.s32 1, %s20
    $region7: #{tpu_custom_call.1} parent=1 // loop_footer_branch
      %19 = sbr.rel target = $region3
    $region8: #{tpu_custom_call.1} parent=1 // loop_exit
      _
    %669 = vsyncpa [#allocation4], 1
    %s670 = scalar_lea.sflag [#allocation4], 1
    %671 = vsyncpa %s670, 1
    %672 = vsyncpa [#allocation7], 1
    %673 = vsyncpa [#allocation5], 1
    %s674 = scalar_lea.sflag [#allocation5], 1
    %675 = vsyncpa %s674, 1

</llo_original>
